<compile_context>
chip_gen: v5e
topology: v5e:2x2
jax: 0.10.0
libtpu: 0.0.40
codegen_flags: <defaults>
</compile_context>

<pallas_src>
import functools

import jax
import jax.numpy as jnp
from jax.experimental import pallas as pl
from jax.experimental.pallas import tpu as pltpu

CIN, COUT, KH, KW = 3, 6, 3, 3
K_TOTAL = CIN * KH * KW          # 27
K_AUG = K_TOTAL + 1              # 28 (extra constant-1 row carries the bias)
COUT_PAD = 8                     # pad 6 -> 8 sublanes for unmasked full-vreg stores


def conv2d_kernel(col_ref, w_ref, o_ref):
    # col_ref: (K_AUG, N*HW)      im2col slab + constant-1 row, lane-dense
    # w_ref:   (COUT_PAD, K_AUG)  weights with bias column, zero-padded rows
    # o_ref:   (COUT_PAD, N*HW)   lane-dense output
    o_ref[...] = jnp.dot(
        w_ref[...], col_ref[...], preferred_element_type=jnp.float32
    ).astype(o_ref.dtype)


@functools.partial(jax.jit, static_argnames=())
def conv2d_pallas(x_nchw, weight_oihw, bias):
    """Conv2d stride=1, padding=1 matching torch.nn.Conv2d(3, 6, 3, 1, 1).

    x_nchw:      (N, Cin, H, W)     float32
    weight_oihw: (Cout, Cin, KH, KW) float32 (PyTorch OIHW layout)
    bias:        (Cout,)            float32
    returns:     (N, Cout, H, W)    float32
    """
    N, Cin, H, W = x_nchw.shape
    assert Cin == CIN
    HW = H * W
    NHW = N * HW

    # --- im2col glue (tiny, fused under jit) -------------------------------
    x_pad = jnp.pad(x_nchw, ((0, 0), (0, 0), (1, 1), (1, 1)))   # (N, Cin, H+2, W+2)
    taps = [x_pad[:, :, kh:kh + H, kw:kw + W]                   # each (N, Cin, H, W)
            for kh in range(KH) for kw in range(KW)]
    # K ordering (cin-major, then kh, kw) matches weight.reshape(COUT, 27).
    col_nk = jnp.stack(taps, axis=2).reshape(N, K_TOTAL, HW)    # (N, 27, HW)
    col = jnp.transpose(col_nk, (1, 0, 2)).reshape(K_TOTAL, NHW)  # (27, N*HW)
    # Append constant-1 row so bias falls out of the matmul.
    col = jnp.concatenate([col, jnp.ones((1, NHW), jnp.float32)], axis=0)  # (28, N*HW)

    # Weights: (6, 27) + bias column -> (6, 28), zero-pad rows -> (8, 28).
    w2d = weight_oihw.reshape(COUT, K_TOTAL)
    w_aug = jnp.concatenate([w2d, bias.reshape(COUT, 1)], axis=1)          # (6, 28)
    w_aug = jnp.pad(w_aug, ((0, COUT_PAD - COUT), (0, 0)))                 # (8, 28)

    # --- single-block pallas_call ------------------------------------------
    out = pl.pallas_call(
        conv2d_kernel,
        out_shape=jax.ShapeDtypeStruct((COUT_PAD, NHW), jnp.float32),
        grid_spec=pltpu.PrefetchScalarGridSpec(
            num_scalar_prefetch=0,
            grid=(1,),  # whole (tiny) problem in one block; nothing to pipeline
            in_specs=[
                pl.BlockSpec((K_AUG, NHW), lambda i: (0, 0)),
                pl.BlockSpec((COUT_PAD, K_AUG), lambda i: (0, 0)),
            ],
            out_specs=pl.BlockSpec((COUT_PAD, NHW), lambda i: (0, 0)),
        ),
        compiler_params=pltpu.CompilerParams(
            dimension_semantics=("arbitrary",),
        ),
    )(col, w_aug)

    # (COUT_PAD, N*HW) -> (N, COUT, H, W): slice padded rows, reshape, transpose.
    out = out[:COUT].reshape(COUT, N, H, W)
    return jnp.transpose(out, (1, 0, 2, 3))


if __name__ == "__main__":
    key = jax.random.PRNGKey(0)
    k_x, k_w, k_b = jax.random.split(key, 3)

    # Deterministic synthetic parameters, shapes per nn.Conv2d(3, 6, 3, 1, 1).
    # Mimic PyTorch default init: uniform(-1/sqrt(fan_in), 1/sqrt(fan_in)).
    fan_in = CIN * KH * KW
    bound = 1.0 / jnp.sqrt(jnp.float32(fan_in))
    weight = jax.random.uniform(k_w, (COUT, CIN, KH, KW), jnp.float32, -bound, bound)
    bias = jax.random.uniform(k_b, (COUT,), jnp.float32, -bound, bound)

    # Small NCHW input consistent with the module: batch=2, channels=3, 16x16.
    x = jax.random.normal(k_x, (2, CIN, 16, 16), dtype=jnp.float32)

    out = conv2d_pallas(x, weight, bias)
    out = jax.block_until_ready(out)

    # Cross-check against XLA's conv (same semantics as torch Conv2d).
    ref = jax.lax.conv_general_dilated(
        x, weight, window_strides=(1, 1), padding=((1, 1), (1, 1)),
        dimension_numbers=("NCHW", "OIHW", "NCHW"),
    ) + bias.reshape(1, COUT, 1, 1)
    assert out.shape == (2, COUT, 16, 16)
    assert jnp.allclose(out, ref, atol=1e-4, rtol=1e-4)

    print("KERNEL_OK")
</pallas_src>

<mosaic_0001>
module attributes {stable_mosaic.version = 11 : i64} {
  func.func @conv2d_kernel(%arg0: i32, %arg1: memref<28x512xf32, #tpu.memory_space<vmem>>, %arg2: memref<8x28xf32, #tpu.memory_space<vmem>>, %arg3: memref<8x512xf32, #tpu.memory_space<vmem>>) attributes {dimension_semantics = [#tpu.dimension_semantics<arbitrary>], iteration_bounds = array<i64: 1>, scalar_prefetch = 0 : i64, scratch_operands = 0 : i64, tpu.core_type = #tpu.core_type<tc>, window_params = [{pipeline_mode = #tpu.pipeline_mode<synchronous>, transform_indices = @transform_0, window_bounds = array<i64: 28, 512>}, {pipeline_mode = #tpu.pipeline_mode<synchronous>, transform_indices = @transform_1, window_bounds = array<i64: 8, 28>}, {pipeline_mode = #tpu.pipeline_mode<synchronous>, transform_indices = @transform_2, window_bounds = array<i64: 8, 512>}]} {
    %c0 = arith.constant 0 : index
    %c0_0 = arith.constant 0 : index
    %0 = vector.load %arg2[%c0, %c0_0] : memref<8x28xf32, #tpu.memory_space<vmem>>, vector<8x28xf32>
    %c0_1 = arith.constant 0 : index
    %c0_2 = arith.constant 0 : index
    %1 = vector.load %arg1[%c0_1, %c0_2] : memref<28x512xf32, #tpu.memory_space<vmem>>, vector<28x512xf32>
    %cst = arith.constant dense<0.000000e+00> : vector<8x512xf32>
    %2 = tpu.matmul %0, %1, %cst {dimension_numbers = #tpu.dot_dimension_numbers<[1], [0], [0], [1], [0, 0, 1, 1], [], []>} : vector<8x28xf32>, vector<28x512xf32>, vector<8x512xf32> -> vector<8x512xf32>
    %c0_3 = arith.constant 0 : index
    %c0_4 = arith.constant 0 : index
    %3 = vector.load %arg3[%c0_3, %c0_4] : memref<8x512xf32, #tpu.memory_space<vmem>>, vector<8x512xf32>
    tpu.vector_store %arg3[%c0_3, %c0_4], %2 {strides = array<i32>} : memref<8x512xf32, #tpu.memory_space<vmem>>, vector<8x512xf32>,
    return
  }
  func.func @transform_0(%arg0: i32) -> (i32, i32) {
    %c0_i32 = arith.constant 0 : i32
    %c0_i32_0 = arith.constant 0 : i32
    %c0_i32_1 = arith.constant 0 : i32
    return %c0_i32, %c0_i32_0 : i32, i32
  }
  func.func @transform_1(%arg0: i32) -> (i32, i32) {
    %c0_i32 = arith.constant 0 : i32
    %c0_i32_0 = arith.constant 0 : i32
    %c0_i32_1 = arith.constant 0 : i32
    return %c0_i32, %c0_i32_0 : i32, i32
  }
  func.func @transform_2(%arg0: i32) -> (i32, i32) {
    %c0_i32 = arith.constant 0 : i32
    %c0_i32_0 = arith.constant 0 : i32
    %c0_i32_1 = arith.constant 0 : i32
    return %c0_i32, %c0_i32_0 : i32, i32
  }
}

</mosaic_0001>

<llo_original>
// kernel: conv2d_pallas.1
$region0: #{conv2d_pallas.1}
  #allocation0 [shape = 'u32[]', space=smem, size = 0x4, offset = 0x4, fixed_abs, tag = 'smem constant byte address 0x4 - core index']
  #allocation1 [shape = 'u32[72,128]{1,0:T(1,128)}', space=vmem, size = 0x9000, scoped, tag = 'internal scratch']
  %s0 = inlined_call_operand.vmem [shape: f32[28,512], index: 0, kind: input, shape index: {}]
  %s1 = inlined_call_operand.vmem [shape: f32[8,28], index: 1, kind: input, shape index: {}]
  %s2 = inlined_call_operand.vmem [shape: f32[8,512], index: 2, kind: output, shape index: {}]
  %s3 = sld [smem:[#allocation0]]
  $region18: #{conv2d_pallas.1} parent=0
    _
  %s5 = ssub.s32 1, %s3
  %s6 = scalar_select 0, %s5, %s3
  // Predicated region
  $region2: #{conv2d_pallas.1} parent=0 // pred_check
    _
  $region3: #{conv2d_pallas.1} parent=0 // pred_check_branch
    %8 = sbr.rel (0) target = $region5
  $region4: #{conv2d_pallas.1} parent=0 // pred_region
    _
  $region5: #{conv2d_pallas.1} parent=0 // pred_fallthru
    _
  // Predicated region
  $region6: #{conv2d_pallas.1} parent=0 // pred_check
    _
  $region7: #{conv2d_pallas.1} parent=0 // pred_check_branch
    %10 = sbr.rel (0) target = $region9
  $region8: #{conv2d_pallas.1} parent=0 // pred_region
    _
  $region9: #{conv2d_pallas.1} parent=0 // pred_fallthru
    _
  %v11 = vld [vmem:[%s1] sm:$0xff]
  %v12 = vld [vmem:[%s0] sm:$0xff]
  %v13 = vld [vmem:[%s0 + $0x8] sm:$0xff]
  %v14 = vld [vmem:[%s0 + $0x10] sm:$0xff]
  %v15 = vld [vmem:[%s0 + $0x18] sm:$0xff]
  %v16 = vld [vmem:[%s0 + $0x20] sm:$0xff]
  %v17 = vld [vmem:[%s0 + $0x28] sm:$0xff]
  %v18 = vld [vmem:[%s0 + $0x30] sm:$0xff]
  %v19 = vld [vmem:[%s0 + $0x38] sm:$0xff]
  %v20 = vld [vmem:[%s0 + $0x40] sm:$0xff]
  %v21 = vld [vmem:[%s0 + $0x48] sm:$0xff]
  %v22 = vld [vmem:[%s0 + $0x50] sm:$0xff]
  %v23 = vld [vmem:[%s0 + $0x58] sm:$0xff]
  %v24 = vld [vmem:[%s0 + $0x60] sm:$0xf]
  %v25 = vld [vmem:[%s0 + $0x68] sm:$0xf]
  %v26 = vld [vmem:[%s0 + $0x70] sm:$0xf]
  %v27 = vld [vmem:[%s0 + $0x78] sm:$0xf]
  %vm28 = vcmask 228352
  %v30 = vsel %vm28, %v11, 0
  %vm32 = vcmask 1043456
  %v34 = vsel %vm32, %v24, 0
  %v37 = vsel %vm32, %v25, 0
  %v40 = vsel %vm32, %v26, 0
  %v43 = vsel %vm32, %v27, 0
  %45 = vmatpush.msra.mxu0 0.0
  %46 = vmatpush.msra.mxu0 0.0
  %47 = vmatpush.msra.mxu0 0.0
  %48 = vmatpush.msra.mxu0 0.0
  %49 = vmatpush.msra.mxu0 0.0
  %50 = vmatpush.msra.mxu0 0.0
  %51 = vmatpush.msra.mxu0 0.0
  %52 = vmatpush.msra.mxu0 0.0
  %53 = vmatpush.msra.mxu0 0.0
  %54 = vmatpush.msra.mxu0 0.0
  %55 = vmatpush.msra.mxu0 0.0
  %56 = vmatpush.msra.mxu0 0.0
  %57 = vmatpush.msra.mxu0 %v34
  %58 = vmatpush.msra.mxu0 %v20
  %59 = vmatpush.msra.mxu0 %v16
  %60 = vmatpush.msra.mxu0 %v12
  %61 = vmatmul.f32.gmra.mxu0 %v30
  %v62 = vpop.f32.mrf.mxu0
  %v63 = vadd.f32 0.0, %v62
  %64 = vdwg.mxu0
  %65 = vmatpush.msra.mxu0 0.0
  %66 = vmatpush.msra.mxu0 0.0
  %67 = vmatpush.msra.mxu0 0.0
  %68 = vmatpush.msra.mxu0 0.0
  %69 = vmatpush.msra.mxu0 0.0
  %70 = vmatpush.msra.mxu0 0.0
  %71 = vmatpush.msra.mxu0 0.0
  %72 = vmatpush.msra.mxu0 0.0
  %73 = vmatpush.msra.mxu0 0.0
  %74 = vmatpush.msra.mxu0 0.0
  %75 = vmatpush.msra.mxu0 0.0
  %76 = vmatpush.msra.mxu0 0.0
  %77 = vmatpush.msra.mxu0 %v37
  %78 = vmatpush.msra.mxu0 %v21
  %79 = vmatpush.msra.mxu0 %v17
  %80 = vmatpush.msra.mxu0 %v13
  %81 = vmatmul.f32.gmra.mxu0 %v30
  %v82 = vpop.f32.mrf.mxu0
  %v83 = vadd.f32 0.0, %v82
  %84 = vdwg.mxu0
  %85 = vmatpush.msra.mxu0 0.0
  %86 = vmatpush.msra.mxu0 0.0
  %87 = vmatpush.msra.mxu0 0.0
  %88 = vmatpush.msra.mxu0 0.0
  %89 = vmatpush.msra.mxu0 0.0
  %90 = vmatpush.msra.mxu0 0.0
  %91 = vmatpush.msra.mxu0 0.0
  %92 = vmatpush.msra.mxu0 0.0
  %93 = vmatpush.msra.mxu0 0.0
  %94 = vmatpush.msra.mxu0 0.0
  %95 = vmatpush.msra.mxu0 0.0
  %96 = vmatpush.msra.mxu0 0.0
  %97 = vmatpush.msra.mxu0 %v40
  %98 = vmatpush.msra.mxu0 %v22
  %99 = vmatpush.msra.mxu0 %v18
  %100 = vmatpush.msra.mxu0 %v14
  %101 = vmatmul.f32.gmra.mxu0 %v30
  %v102 = vpop.f32.mrf.mxu0
  %v103 = vadd.f32 0.0, %v102
  %104 = vdwg.mxu0
  %105 = vmatpush.msra.mxu0 0.0
  %106 = vmatpush.msra.mxu0 0.0
  %107 = vmatpush.msra.mxu0 0.0
  %108 = vmatpush.msra.mxu0 0.0
  %109 = vmatpush.msra.mxu0 0.0
  %110 = vmatpush.msra.mxu0 0.0
  %111 = vmatpush.msra.mxu0 0.0
  %112 = vmatpush.msra.mxu0 0.0
  %113 = vmatpush.msra.mxu0 0.0
  %114 = vmatpush.msra.mxu0 0.0
  %115 = vmatpush.msra.mxu0 0.0
  %116 = vmatpush.msra.mxu0 0.0
  %117 = vmatpush.msra.mxu0 %v43
  %118 = vmatpush.msra.mxu0 %v23
  %119 = vmatpush.msra.mxu0 %v19
  %120 = vmatpush.msra.mxu0 %v15
  %121 = vmatmul.f32.gmra.mxu0 %v30
  %v122 = vpop.f32.mrf.mxu0
  %v123 = vadd.f32 0.0, %v122
  %124 = vdwg.mxu0
  %125 = vst [vmem:[%s2] sm:$0xff] %v63
  %126 = vst [vmem:[%s2 + $0x8] sm:$0xff] %v83
  %127 = vst [vmem:[%s2 + $0x10] sm:$0xff] %v103
  %128 = vst [vmem:[%s2 + $0x18] sm:$0xff] %v123
  // Predicated region
  $region10: #{conv2d_pallas.1} parent=0 // pred_check
    _
  $region11: #{conv2d_pallas.1} parent=0 // pred_check_branch
    %130 = sbr.rel (0) target = $region13
  $region12: #{conv2d_pallas.1} parent=0 // pred_region
    _
  $region13: #{conv2d_pallas.1} parent=0 // pred_fallthru
    _
  // Predicated region
  $region14: #{conv2d_pallas.1} parent=0 // pred_check
    _
  $region15: #{conv2d_pallas.1} parent=0 // pred_check_branch
    %132 = sbr.rel (0) target = $region17
  $region16: #{conv2d_pallas.1} parent=0 // pred_region
    _
  $region17: #{conv2d_pallas.1} parent=0 // pred_fallthru
    _

</llo_original>
